<compile_context>
chip_gen: v6e
topology: v6e:2x2x1
jax: 0.10.0
libtpu: 0.0.40
codegen_flags: <defaults>
</compile_context>

<pallas_src>
import jax
import jax.numpy as jnp
import numpy as np
from jax.experimental import pallas as pl
from jax.experimental.pallas import tpu as pltpu

N_IN_CH = 5
N_OUT_CH = 10
KSIZE = 3
STRIDE = 2
# TODO(synk): torch.nn.GroupNorm(8, 10) is invalid in PyTorch (10 % 8 != 0,
# raises at __init__); we use num_groups=2 (which divides 10) instead.
NUM_GROUPS = 2
GN_EPS = 1e-5


def _fused_kernel(p_ref, w_ref, gamma_ref, beta_ref, o_ref):
    # p_ref:     (1, Cin*K*K, NPIX)  im2col patches for one batch element
    # w_ref:     (Cout, Cin*K*K)     flipped conv-transpose weights (VMEM)
    # gamma_ref: (Cout, 1)           GroupNorm scale
    # beta_ref:  (Cout, 1)           GroupNorm shift
    # o_ref:     (1, Cout, NPIX)     lane-dense output
    #
    # One MXU matmul: (Cout, 45) @ (45, NPIX) -> (Cout, NPIX), f32 accumulate.
    v = jnp.dot(w_ref[...], p_ref[0], preferred_element_type=jnp.float32)

    # v2..v5: (conv + 3).clamp_min(0).clamp_max(6) / 6
    v = jnp.clip(v + 3.0, 0.0, 6.0) * (1.0 / 6.0)

    cout, npix = v.shape
    cg = cout // NUM_GROUPS
    inv_cnt = 1.0 / float(cg * npix)

    rows = []
    for g in range(NUM_GROUPS):
        grp = v[g * cg:(g + 1) * cg, :]                 # (cg, NPIX) lane-dense
        mean = jnp.sum(grp) * inv_cnt
        centered = grp - mean
        var = jnp.sum(centered * centered) * inv_cnt    # biased variance
        inv_std = jax.lax.rsqrt(var + GN_EPS)
        gam = gamma_ref[g * cg:(g + 1) * cg, :]         # (cg, 1)
        bet = beta_ref[g * cg:(g + 1) * cg, :]
        rows.append(centered * inv_std * gam + bet)

    out = jnp.concatenate(rows, axis=0)                 # (Cout, NPIX)
    o_ref[0, :, :] = out.astype(o_ref.dtype)


@jax.jit
def model_forward(x, w_t, gamma, beta):
    """x: (N, 5, H, W) f32; w_t: ConvTranspose2d weight (Cin, Cout, K, K)."""
    N, Cin, H, W = x.shape
    Cout, K = w_t.shape[1], w_t.shape[2]
    s = STRIDE
    pad = K - 1                      # conv_transpose padding=0 -> conv pad K-1
    Ho, Wo = (H - 1) * s + K, (W - 1) * s + K
    NPIX = Ho * Wo
    CKK = Cin * K * K

    # im2col of the zero-dilated, edge-padded input (one small XLA fusion).
    Hd, Wd = (H - 1) * s + 1, (W - 1) * s + 1
    x_dil = jnp.zeros((N, Cin, Hd, Wd), x.dtype).at[:, :, ::s, ::s].set(x)
    x_pad = jnp.pad(x_dil, ((0, 0), (0, 0), (pad, pad), (pad, pad)))
    cols = [x_pad[:, :, kh:kh + Ho, kw:kw + Wo]
            for kh in range(K) for kw in range(K)]
    # (N, Cin, K*K, Ho, Wo) -> (N, Cin*K*K, Ho*Wo); row index = ci*K*K + kh*K + kw
    patches = jnp.stack(cols, axis=2).reshape(N, CKK, NPIX)

    # Flip + transpose the ConvTranspose2d weight into a 2-D conv weight whose
    # reduction-dim ordering matches the patch rows.
    w2d = jnp.transpose(w_t[:, :, ::-1, ::-1], (1, 0, 2, 3)).reshape(Cout, CKK)

    out2d = pl.pallas_call(
        _fused_kernel,
        out_shape=jax.ShapeDtypeStruct((N, Cout, NPIX), jnp.float32),
        grid=(N,),
        in_specs=[
            pl.BlockSpec((1, CKK, NPIX), lambda n: (n, 0, 0)),
            pl.BlockSpec((Cout, CKK), lambda n: (0, 0)),
            pl.BlockSpec((Cout, 1), lambda n: (0, 0)),
            pl.BlockSpec((Cout, 1), lambda n: (0, 0)),
        ],
        out_specs=pl.BlockSpec((1, Cout, NPIX), lambda n: (n, 0, 0)),
        compiler_params=pltpu.CompilerParams(
            dimension_semantics=("parallel",)),
    )(patches, w2d, gamma.reshape(Cout, 1), beta.reshape(Cout, 1))

    # Metadata-only reshape back to NCHW.
    return out2d.reshape(N, Cout, Ho, Wo)


def _reference(x, w_t, gamma, beta):
    """Pure-JAX reference (XLA conv) for correctness checking."""
    N, Cin, H, W = x.shape
    Cout, K = w_t.shape[1], w_t.shape[2]
    w_conv = jnp.transpose(w_t[:, :, ::-1, ::-1], (1, 0, 2, 3))
    pad = K - 1
    conv = jax.lax.conv_general_dilated(
        x, w_conv, window_strides=(1, 1),
        padding=((pad, pad), (pad, pad)),
        lhs_dilation=(STRIDE, STRIDE),
        dimension_numbers=("NCHW", "OIHW", "NCHW"))
    v = jnp.clip(conv + 3.0, 0.0, 6.0) / 6.0
    Ho, Wo = v.shape[2], v.shape[3]
    vr = v.reshape(N, NUM_GROUPS, Cout // NUM_GROUPS, Ho, Wo)
    mean = vr.mean(axis=(2, 3, 4), keepdims=True)
    var = ((vr - mean) ** 2).mean(axis=(2, 3, 4), keepdims=True)
    vn = ((vr - mean) / jnp.sqrt(var + GN_EPS)).reshape(N, Cout, Ho, Wo)
    return vn * gamma.reshape(1, Cout, 1, 1) + beta.reshape(1, Cout, 1, 1)


if __name__ == "__main__":
    key = jax.random.PRNGKey(0)
    k_x, k_w = jax.random.split(key)

    # Small, module-consistent shapes: batch=2, in_channels=5, spatial=16.
    x = jax.random.normal(k_x, (2, N_IN_CH, 16, 16), jnp.float32)

    # ConvTranspose2d weight: (in_channels, out_channels, kH, kW), uniform init.
    bound = 1.0 / np.sqrt(N_IN_CH * KSIZE * KSIZE)
    w_t = jax.random.uniform(k_w, (N_IN_CH, N_OUT_CH, KSIZE, KSIZE),
                             jnp.float32, minval=-bound, maxval=bound)
    # GroupNorm affine params (PyTorch default init: weight=1, bias=0).
    gamma = jnp.ones((N_OUT_CH,), jnp.float32)
    beta = jnp.zeros((N_OUT_CH,), jnp.float32)

    out = jax.block_until_ready(model_forward(x, w_t, gamma, beta))

    ref = jax.block_until_ready(_reference(x, w_t, gamma, beta))
    assert out.shape == (2, N_OUT_CH, 33, 33), out.shape
    assert np.allclose(np.asarray(out), np.asarray(ref), rtol=1e-4, atol=1e-4), (
        "Pallas kernel disagrees with reference")

    print("KERNEL_OK")
</pallas_src>

<mosaic_0001>
module attributes {stable_mosaic.version = 11 : i64} {
  func.func @_fused_kernel(%arg0: i32, %arg1: memref<1x45x1089xf32, #tpu.memory_space<vmem>>, %arg2: memref<10x45xf32, #tpu.memory_space<vmem>>, %arg3: memref<10x1xf32, #tpu.memory_space<vmem>>, %arg4: memref<10x1xf32, #tpu.memory_space<vmem>>, %arg5: memref<1x10x1089xf32, #tpu.memory_space<vmem>>) attributes {dimension_semantics = [#tpu.dimension_semantics<parallel>], iteration_bounds = array<i64: 2>, scalar_prefetch = 0 : i64, scratch_operands = 0 : i64, tpu.core_type = #tpu.core_type<tc>, window_params = [{transform_indices = @transform_0, window_bounds = array<i64: 1, 45, 1089>}, {pipeline_mode = #tpu.pipeline_mode<synchronous>, transform_indices = @transform_1, window_bounds = array<i64: 10, 45>}, {pipeline_mode = #tpu.pipeline_mode<synchronous>, transform_indices = @transform_2, window_bounds = array<i64: 10, 1>}, {pipeline_mode = #tpu.pipeline_mode<synchronous>, transform_indices = @transform_3, window_bounds = array<i64: 10, 1>}, {transform_indices = @transform_4, window_bounds = array<i64: 1, 10, 1089>}]} {
    %c0 = arith.constant 0 : index
    %c0_0 = arith.constant 0 : index
    %0 = vector.load %arg2[%c0, %c0_0] : memref<10x45xf32, #tpu.memory_space<vmem>>, vector<10x45xf32>
    %c0_1 = arith.constant 0 : index
    %c0_2 = arith.constant 0 : index
    %c0_3 = arith.constant 0 : index
    %1 = vector.load %arg1[%c0_1, %c0_2, %c0_3] : memref<1x45x1089xf32, #tpu.memory_space<vmem>>, vector<1x45x1089xf32>
    %2 = vector.shape_cast %1 : vector<1x45x1089xf32> to vector<45x1089xf32>
    %cst = arith.constant dense<0.000000e+00> : vector<10x1089xf32>
    %3 = tpu.matmul %0, %2, %cst {dimension_numbers = #tpu.dot_dimension_numbers<[1], [0], [0], [1], [0, 0, 1, 1], [], []>} : vector<10x45xf32>, vector<45x1089xf32>, vector<10x1089xf32> -> vector<10x1089xf32>
    %cst_4 = arith.constant 3.000000e+00 : f32
    %4 = vector.broadcast %cst_4 : f32 to vector<10x1089xf32>
    %5 = arith.addf %3, %4 : vector<10x1089xf32>
    %cst_5 = arith.constant 0.000000e+00 : f32
    %cst_6 = arith.constant 6.000000e+00 : f32
    %6 = vector.broadcast %cst_5 : f32 to vector<10x1089xf32>
    %7 = arith.maximumf %6, %5 : vector<10x1089xf32>
    %8 = vector.broadcast %cst_6 : f32 to vector<10x1089xf32>
    %9 = arith.minimumf %8, %7 : vector<10x1089xf32>
    %cst_7 = arith.constant 0.166666672 : f32
    %10 = vector.broadcast %cst_7 : f32 to vector<10x1089xf32>
    %11 = arith.mulf %9, %10 : vector<10x1089xf32>
    %12 = vector.extract_strided_slice %11 {offsets = [0, 0], sizes = [5, 1089], strides = [1, 1]} : vector<10x1089xf32> to vector<5x1089xf32>
    %13 = vector.shape_cast %12 : vector<5x1089xf32> to vector<1x5x1089xf32>
    %cst_8 = arith.constant dense<0.000000e+00> : vector<1xf32>
    %14 = vector.multi_reduction <add>, %13, %cst_8 [1, 2] : vector<1x5x1089xf32> to vector<1xf32>
    %15 = vector.shape_cast %14 : vector<1xf32> to vector<1x1x1xf32>
    %16 = vector.extract %15[0, 0, 0] : f32 from vector<1x1x1xf32>
    %cst_9 = arith.constant 1.83654731E-4 : f32
    %17 = arith.mulf %16, %cst_9 : f32
    %18 = vector.broadcast %17 : f32 to vector<5x1089xf32>
    %19 = arith.subf %12, %18 : vector<5x1089xf32>
    %20 = arith.mulf %19, %19 : vector<5x1089xf32>
    %21 = vector.shape_cast %20 : vector<5x1089xf32> to vector<1x5x1089xf32>
    %cst_10 = arith.constant dense<0.000000e+00> : vector<1xf32>
    %22 = vector.multi_reduction <add>, %21, %cst_10 [1, 2] : vector<1x5x1089xf32> to vector<1xf32>
    %23 = vector.shape_cast %22 : vector<1xf32> to vector<1x1x1xf32>
    %24 = vector.extract %23[0, 0, 0] : f32 from vector<1x1x1xf32>
    %cst_11 = arith.constant 1.83654731E-4 : f32
    %25 = arith.mulf %24, %cst_11 : f32
    %cst_12 = arith.constant 9.99999974E-6 : f32
    %26 = arith.addf %25, %cst_12 : f32
    %27 = math.rsqrt %26 : f32
    %c0_13 = arith.constant 0 : index
    %c0_14 = arith.constant 0 : index
    %28 = vector.load %arg3[%c0_13, %c0_14] : memref<10x1xf32, #tpu.memory_space<vmem>>, vector<5x1xf32>
    %c0_15 = arith.constant 0 : index
    %c0_16 = arith.constant 0 : index
    %29 = vector.load %arg4[%c0_15, %c0_16] : memref<10x1xf32, #tpu.memory_space<vmem>>, vector<5x1xf32>
    %30 = vector.broadcast %27 : f32 to vector<5x1089xf32>
    %31 = arith.mulf %19, %30 : vector<5x1089xf32>
    %32 = vector.broadcast %28 : vector<5x1xf32> to vector<5x1089xf32>
    %33 = arith.mulf %31, %32 : vector<5x1089xf32>
    %34 = vector.broadcast %29 : vector<5x1xf32> to vector<5x1089xf32>
    %35 = arith.addf %33, %34 : vector<5x1089xf32>
    %36 = vector.extract_strided_slice %11 {offsets = [5, 0], sizes = [5, 1089], strides = [1, 1]} : vector<10x1089xf32> to vector<5x1089xf32>
    %37 = vector.shape_cast %36 : vector<5x1089xf32> to vector<1x5x1089xf32>
    %cst_17 = arith.constant dense<0.000000e+00> : vector<1xf32>
    %38 = vector.multi_reduction <add>, %37, %cst_17 [1, 2] : vector<1x5x1089xf32> to vector<1xf32>
    %39 = vector.shape_cast %38 : vector<1xf32> to vector<1x1x1xf32>
    %40 = vector.extract %39[0, 0, 0] : f32 from vector<1x1x1xf32>
    %cst_18 = arith.constant 1.83654731E-4 : f32
    %41 = arith.mulf %40, %cst_18 : f32
    %42 = vector.broadcast %41 : f32 to vector<5x1089xf32>
    %43 = arith.subf %36, %42 : vector<5x1089xf32>
    %44 = arith.mulf %43, %43 : vector<5x1089xf32>
    %45 = vector.shape_cast %44 : vector<5x1089xf32> to vector<1x5x1089xf32>
    %cst_19 = arith.constant dense<0.000000e+00> : vector<1xf32>
    %46 = vector.multi_reduction <add>, %45, %cst_19 [1, 2] : vector<1x5x1089xf32> to vector<1xf32>
    %47 = vector.shape_cast %46 : vector<1xf32> to vector<1x1x1xf32>
    %48 = vector.extract %47[0, 0, 0] : f32 from vector<1x1x1xf32>
    %cst_20 = arith.constant 1.83654731E-4 : f32
    %49 = arith.mulf %48, %cst_20 : f32
    %cst_21 = arith.constant 9.99999974E-6 : f32
    %50 = arith.addf %49, %cst_21 : f32
    %51 = math.rsqrt %50 : f32
    %c5 = arith.constant 5 : index
    %c0_22 = arith.constant 0 : index
    %52 = vector.load %arg3[%c5, %c0_22] : memref<10x1xf32, #tpu.memory_space<vmem>>, vector<5x1xf32>
    %c5_23 = arith.constant 5 : index
    %c0_24 = arith.constant 0 : index
    %53 = vector.load %arg4[%c5_23, %c0_24] : memref<10x1xf32, #tpu.memory_space<vmem>>, vector<5x1xf32>
    %54 = vector.broadcast %51 : f32 to vector<5x1089xf32>
    %55 = arith.mulf %43, %54 : vector<5x1089xf32>
    %56 = vector.broadcast %52 : vector<5x1xf32> to vector<5x1089xf32>
    %57 = arith.mulf %55, %56 : vector<5x1089xf32>
    %58 = vector.broadcast %53 : vector<5x1xf32> to vector<5x1089xf32>
    %59 = arith.addf %57, %58 : vector<5x1089xf32>
    %60 = tpu.concatenate %35, %59 in 0 : vector<5x1089xf32>, vector<5x1089xf32> -> vector<10x1089xf32>
    %c0_25 = arith.constant 0 : index
    %c0_26 = arith.constant 0 : index
    %c0_27 = arith.constant 0 : index
    %61 = vector.load %arg5[%c0_25, %c0_26, %c0_27] : memref<1x10x1089xf32, #tpu.memory_space<vmem>>, vector<1x10x1089xf32>
    %62 = vector.shape_cast %61 : vector<1x10x1089xf32> to vector<10x1089xf32>
    %63 = vector.shape_cast %60 : vector<10x1089xf32> to vector<1x10x1089xf32>
    tpu.vector_store %arg5[%c0_25, %c0_26, %c0_27], %63 {strides = array<i32>} : memref<1x10x1089xf32, #tpu.memory_space<vmem>>, vector<1x10x1089xf32>,
    return
  }
  func.func @transform_0(%arg0: i32) -> (i32, i32, i32) {
    %c0_i32 = arith.constant 0 : i32
    %c0_i32_0 = arith.constant 0 : i32
    %c0_i32_1 = arith.constant 0 : i32
    return %arg0, %c0_i32, %c0_i32_0 : i32, i32, i32
  }
  func.func @transform_1(%arg0: i32) -> (i32, i32) {
    %c0_i32 = arith.constant 0 : i32
    %c0_i32_0 = arith.constant 0 : i32
    %c0_i32_1 = arith.constant 0 : i32
    return %c0_i32, %c0_i32_0 : i32, i32
  }
  func.func @transform_2(%arg0: i32) -> (i32, i32) {
    %c0_i32 = arith.constant 0 : i32
    %c0_i32_0 = arith.constant 0 : i32
    %c0_i32_1 = arith.constant 0 : i32
    return %c0_i32, %c0_i32_0 : i32, i32
  }
  func.func @transform_3(%arg0: i32) -> (i32, i32) {
    %c0_i32 = arith.constant 0 : i32
    %c0_i32_0 = arith.constant 0 : i32
    %c0_i32_1 = arith.constant 0 : i32
    return %c0_i32, %c0_i32_0 : i32, i32
  }
  func.func @transform_4(%arg0: i32) -> (i32, i32, i32) {
    %c0_i32 = arith.constant 0 : i32
    %c0_i32_0 = arith.constant 0 : i32
    %c0_i32_1 = arith.constant 0 : i32
    return %arg0, %c0_i32, %c0_i32_0 : i32, i32, i32
  }
}

</mosaic_0001>

<llo_original>
// kernel: model_forward.1
$region0: #{model_forward.1}
  #allocation0 [shape = 'u32[]', space=smem, size = 0x4, offset = 0x4, fixed_abs, tag = 'smem constant byte address 0x4 - core index']
  #allocation1 [shape = 'u32[144,128]{1,0:T(1,128)}', space=vmem, size = 0x12000, scoped, tag = 'internal scratch']
  %s0 = inlined_call_operand.vmem [shape: f32[2,45,1089], index: 0, kind: input, shape index: {}]
  %s1 = inlined_call_operand.vmem [shape: f32[10,45], index: 1, kind: input, shape index: {}]
  %s2 = inlined_call_operand.vmem [shape: f32[10,1], index: 2, kind: input, shape index: {}]
  %s3 = inlined_call_operand.vmem [shape: f32[10,1], index: 3, kind: input, shape index: {}]
  %s4 = inlined_call_operand.vmem [shape: f32[2,10,1089], index: 4, kind: output, shape index: {}]
  %s5 = sld [smem:[#allocation0]]
  $region49: #{model_forward.1} parent=0
    _
  %s7 = ssub.s32 1, %s5
  %s8 = scalar_select 0, %s7, %s5
  loop: start=0, step=1, limit=4
  $region2: #{model_forward.1} parent=0 // loop_pre_header
    _
  $region3: #{model_forward.1} parent=0 // loop_header
    %s10 = sphi 0, %s14
    %p11 = scmp.ge.s32.totalorder %s10, 4
    %s20 = sphi 0, %s22
    %s23 = sphi 0, %s20
    %s24 = sphi 0, %s23
    %s40 = sphi 0, %s24
    %s44 = sphi 0, %s44
    %s46 = sphi 0, %s44
    %s47 = sphi 0, %s46
    %s61 = sphi 0, %s47
    %s65 = sphi 0, %s65
    %s67 = sphi 0, %s65
    %s68 = sphi 0, %s67
    %s82 = sphi 0, %s68
    %s86 = sphi 0, %s86
    %s88 = sphi 0, %s86
    %s89 = sphi 0, %s88
    %s103 = sphi 0, %s89
    %s109 = sphi 0, %s111
    %s112 = sphi 0, %s109
    %s113 = sphi 0, %s112
    %s129 = sphi 0, %s113
  $region4: #{model_forward.1} parent=0 // loop_header_branch
    %13 = sbr.rel (%p11) target = $region8
  $region5: #{model_forward.1} parent=0 // loop_body
    %s15 = ssub.s32 %s10, 1
    %s16 = ssub.s32 %s10, 2
    %s17 = sadd.s32 %s10, 1
    %s18 = ssub.s32 %s10, %s17
    %p19 = scmp.eq.s32.totalorder %s18, 0
    %s21 = sadd.s32 %s20, 1
    %s22 = scalar_select %p19, %s20, %s21
    %p25 = pneg %p19
    %p26 = scmp.eq.s32.totalorder %s10, 1
    %p27 = por %p25, %p26
    %p28 = scmp.ne.s32.totalorder %s20, %s23
    %p29 = scmp.eq.s32.totalorder %s10, 0
    %p30 = por %p28, %p29
    %p31 = scmp.ne.s32.totalorder %s20, %s23
    %p32 = scmp.eq.s32.totalorder %s15, 1
    %p33 = por %p31, %p32
    %p34 = scmp.ne.s32.totalorder %s23, %s24
    %p35 = scmp.eq.s32.totalorder %s15, 0
    %p36 = por %p34, %p35
    %p37 = scmp.ne.s32.totalorder %s23, %s24
    %p38 = scmp.eq.s32.totalorder %s16, 1
    %p39 = por %p37, %p38
    %p41 = scmp.ne.s32.totalorder %s24, %s40
    %p42 = scmp.eq.s32.totalorder %s16, 0
    %p43 = por %p41, %p42
    %s45 = sadd.s32 %s44, 1
    %p48 = scmp.eq.s32.totalorder %s10, 1
    %p49 = scmp.ne.s32.totalorder %s44, %s46
    %p50 = scmp.eq.s32.totalorder %s10, 0
    %p51 = por %p49, %p50
    %p52 = scmp.ne.s32.totalorder %s44, %s46
    %p53 = scmp.eq.s32.totalorder %s15, 1
    %p54 = por %p52, %p53
    %p55 = scmp.ne.s32.totalorder %s46, %s47
    %p56 = scmp.eq.s32.totalorder %s15, 0
    %p57 = por %p55, %p56
    %p58 = scmp.ne.s32.totalorder %s46, %s47
    %p59 = scmp.eq.s32.totalorder %s16, 1
    %p60 = por %p58, %p59
    %p62 = scmp.ne.s32.totalorder %s47, %s61
    %p63 = scmp.eq.s32.totalorder %s16, 0
    %p64 = por %p62, %p63
    %s66 = sadd.s32 %s65, 1
    %p69 = scmp.eq.s32.totalorder %s10, 1
    %p70 = scmp.ne.s32.totalorder %s65, %s67
    %p71 = scmp.eq.s32.totalorder %s10, 0
    %p72 = por %p70, %p71
    %p73 = scmp.ne.s32.totalorder %s65, %s67
    %p74 = scmp.eq.s32.totalorder %s15, 1
    %p75 = por %p73, %p74
    %p76 = scmp.ne.s32.totalorder %s67, %s68
    %p77 = scmp.eq.s32.totalorder %s15, 0
    %p78 = por %p76, %p77
    %p79 = scmp.ne.s32.totalorder %s67, %s68
    %p80 = scmp.eq.s32.totalorder %s16, 1
    %p81 = por %p79, %p80
    %p83 = scmp.ne.s32.totalorder %s68, %s82
    %p84 = scmp.eq.s32.totalorder %s16, 0
    %p85 = por %p83, %p84
    %s87 = sadd.s32 %s86, 1
    %p90 = scmp.eq.s32.totalorder %s10, 1
    %p91 = scmp.ne.s32.totalorder %s86, %s88
    %p92 = scmp.eq.s32.totalorder %s10, 0
    %p93 = por %p91, %p92
    %p94 = scmp.ne.s32.totalorder %s86, %s88
    %p95 = scmp.eq.s32.totalorder %s15, 1
    %p96 = por %p94, %p95
    %p97 = scmp.ne.s32.totalorder %s88, %s89
    %p98 = scmp.eq.s32.totalorder %s15, 0
    %p99 = por %p97, %p98
    %p100 = scmp.ne.s32.totalorder %s88, %s89
    %p101 = scmp.eq.s32.totalorder %s16, 1
    %p102 = por %p100, %p101
    %p104 = scmp.ne.s32.totalorder %s89, %s103
    %p105 = scmp.eq.s32.totalorder %s16, 0
    %p106 = por %p104, %p105
    %s107 = ssub.s32 %s10, %s17
    %p108 = scmp.eq.s32.totalorder %s107, 0
    %s110 = sadd.s32 %s109, 1
    %s111 = scalar_select %p108, %s109, %s110
    %p114 = pneg %p108
    %p115 = scmp.eq.s32.totalorder %s10, 1
    %p116 = por %p114, %p115
    %p117 = scmp.ne.s32.totalorder %s109, %s112
    %p118 = scmp.eq.s32.totalorder %s10, 0
    %p119 = por %p117, %p118
    %p120 = scmp.ne.s32.totalorder %s109, %s112
    %p121 = scmp.eq.s32.totalorder %s15, 1
    %p122 = por %p120, %p121
    %p123 = scmp.ne.s32.totalorder %s112, %s113
    %p124 = scmp.eq.s32.totalorder %s15, 0
    %p125 = por %p123, %p124
    %p126 = scmp.ne.s32.totalorder %s112, %s113
    %p127 = scmp.eq.s32.totalorder %s16, 1
    %p128 = por %p126, %p127
    %p130 = scmp.ne.s32.totalorder %s113, %s129
    %p131 = scmp.eq.s32.totalorder %s16, 0
    %p132 = por %p130, %p131
    %p133 = scmp.le.s32.totalorder 1, %s10
    %p134 = scmp.lt.s32.totalorder %s10, 3
    %p135 = pnand %p133, %p134
    %p136 = pneg %p135
    // Predicated region
    $region9: #{model_forward.1} parent=5 // pred_check
      _
    $region10: #{model_forward.1} parent=5 // pred_check_branch
      %138 = sbr.rel (%p135) target = $region12
    $region11: #{model_forward.1} parent=5 // pred_region
      %s139 = ssub.s32 %s10, 1
      // Predicated region
      $region13: #{model_forward.1} parent=11 // pred_check
        %p140 = pneg %p57
      $region14: #{model_forward.1} parent=11 // pred_check_branch
        %142 = sbr.rel (%p140) target = $region16
      $region15: #{model_forward.1} parent=11 // pred_region
        _
      $region16: #{model_forward.1} parent=11 // pred_fallthru
        _
      // Predicated region
      $region17: #{model_forward.1} parent=11 // pred_check
        %p143 = pneg %p78
      $region18: #{model_forward.1} parent=11 // pred_check_branch
        %145 = sbr.rel (%p143) target = $region20
      $region19: #{model_forward.1} parent=11 // pred_region
        _
      $region20: #{model_forward.1} parent=11 // pred_fallthru
        _
      // Predicated region
      $region21: #{model_forward.1} parent=11 // pred_check
        %p146 = pneg %p99
      $region22: #{model_forward.1} parent=11 // pred_check_branch
        %148 = sbr.rel (%p146) target = $region24
      $region23: #{model_forward.1} parent=11 // pred_region
        _
      $region24: #{model_forward.1} parent=11 // pred_fallthru
        _
    $region12: #{model_forward.1} parent=5 // pred_fallthru
      _
    %p149 = scmp.lt.s32.totalorder %s10, 2
    // Predicated region
    $region25: #{model_forward.1} parent=5 // pred_check
      %p150 = pneg %p149
    $region26: #{model_forward.1} parent=5 // pred_check_branch
      %152 = sbr.rel (%p150) target = $region28
    $region27: #{model_forward.1} parent=5 // pred_region
      // Predicated region
      $region29: #{model_forward.1} parent=27 // pred_check
        %p153 = pneg %p30
      $region30: #{model_forward.1} parent=27 // pred_check_branch
        %155 = sbr.rel (%p153) target = $region32
      $region31: #{model_forward.1} parent=27 // pred_region
        %p156 = scmp.lt.s32.totalorder %s10, 1
        %s157 = scalar_select %p156, %s10, 1
        %s158 = smul.addr %s157, 54
        %s159 = smul.addr %s158, 8
        %s160 = scalar_lea.vmem %s0, %s159
      $region32: #{model_forward.1} parent=27 // pred_fallthru
        _
    $region28: #{model_forward.1} parent=5 // pred_fallthru
      _
    %p161 = scmp.le.s32.totalorder 1, %s10
    %p162 = scmp.lt.s32.totalorder %s10, 3
    %p163 = pnand %p161, %p162
    %p164 = pneg %p163
    // Predicated region
    $region33: #{model_forward.1} parent=5 // pred_check
      _
    $region34: #{model_forward.1} parent=5 // pred_check_branch
      %166 = sbr.rel (%p163) target = $region36
    $region35: #{model_forward.1} parent=5 // pred_region
      %s167 = ssub.s32 %s10, 1
      %p168 = scmp.lt.s32.totalorder %s15, 1
      %s169 = scalar_select %p168, %s15, 1
      %s170 = smul.addr %s169, 54
      %s171 = smul.addr %s170, 8
      %s172 = scalar_lea.vmem %s0, %s171
      %p173 = pneg %p36
      %p174 = pneg %p33
      %p175 = pneg %p57
      %p176 = pneg %p54
      %p177 = pneg %p78
      %p178 = pneg %p75
      %p179 = pneg %p99
      %p180 = pneg %p96
      %p181 = pneg %p125
      %p182 = pneg %p122
      %p183 = scmp.lt.s32.totalorder %s15, 1
      %s184 = scalar_select %p183, %s15, 1
      %s185 = smul.addr %s184, 18
      %s186 = smul.addr %s185, 8
      %s187 = scalar_lea.vmem %s4, %s186
      %p188 = scmp.lt.s32.totalorder %s15, 1
      %s189 = scalar_select %p188, %s15, 1
      %s190 = smul.addr %s189, 54
      %s191 = smul.addr %s190, 8
      %s192 = scalar_lea.vmem %s0, %s191
      %p193 = scmp.lt.s32.totalorder %s15, 1
      %s194 = scalar_select %p193, %s15, 1
      %s195 = smul.addr %s194, 18
      %s196 = smul.addr %s195, 8
      %s197 = scalar_lea.vmem %s4, %s196
      %v198 = vld [vmem:[%s1] sm:$0xff]
      %v199 = vld [vmem:[%s1 + $0x8] sm:$0x3]
      %v200 = vld [vmem:[%s192] sm:$0xff]
      %v201 = vld [vmem:[%s192 + $0x8] sm:$0xff]
      %v202 = vld [vmem:[%s192 + $0x10] sm:$0xff]
      %v203 = vld [vmem:[%s192 + $0x18] sm:$0xff]
      %v204 = vld [vmem:[%s192 + $0x20] sm:$0xff]
      %v205 = vld [vmem:[%s192 + $0x28] sm:$0xff]
      %v206 = vld [vmem:[%s192 + $0x30] sm:$0xff]
      %v207 = vld [vmem:[%s192 + $0x38] sm:$0xff]
      %v208 = vld [vmem:[%s192 + $0x40] sm:$0xff]
      %v209 = vld [vmem:[%s192 + $0x48] sm:$0xff]
      %v210 = vld [vmem:[%s192 + $0x50] sm:$0xff]
      %v211 = vld [vmem:[%s192 + $0x58] sm:$0xff]
      %v212 = vld [vmem:[%s192 + $0x60] sm:$0xff]
      %v213 = vld [vmem:[%s192 + $0x68] sm:$0xff]
      %v214 = vld [vmem:[%s192 + $0x70] sm:$0xff]
      %v215 = vld [vmem:[%s192 + $0x78] sm:$0xff]
      %v216 = vld [vmem:[%s192 + $0x80] sm:$0xff]
      %v217 = vld [vmem:[%s192 + $0x88] sm:$0xff]
      %v218 = vld [vmem:[%s192 + $0x90] sm:$0xff]
      %v219 = vld [vmem:[%s192 + $0x98] sm:$0xff]
      %v220 = vld [vmem:[%s192 + $0xa0] sm:$0xff]
      %v221 = vld [vmem:[%s192 + $0xa8] sm:$0xff]
      %v222 = vld [vmem:[%s192 + $0xb0] sm:$0xff]
      %v223 = vld [vmem:[%s192 + $0xb8] sm:$0xff]
      %v224 = vld [vmem:[%s192 + $0xc0] sm:$0xff]
      %v225 = vld [vmem:[%s192 + $0xc8] sm:$0xff]
      %v226 = vld [vmem:[%s192 + $0xd0] sm:$0xff]
      %v227 = vld [vmem:[%s192 + $0xd8] sm:$0xff]
      %v228 = vld [vmem:[%s192 + $0xe0] sm:$0xff]
      %v229 = vld [vmem:[%s192 + $0xe8] sm:$0xff]
      %v230 = vld [vmem:[%s192 + $0xf0] sm:$0xff]
      %v231 = vld [vmem:[%s192 + $0xf8] sm:$0xff]
      %v232 = vld [vmem:[%s192 + $0x100] sm:$0xff]
      %v233 = vld [vmem:[%s192 + $0x108] sm:$0xff]
      %v234 = vld [vmem:[%s192 + $0x110] sm:$0xff]
      %v235 = vld [vmem:[%s192 + $0x118] sm:$0xff]
      %v236 = vld [vmem:[%s192 + $0x120] sm:$0xff]
      %v237 = vld [vmem:[%s192 + $0x128] sm:$0xff]
      %v238 = vld [vmem:[%s192 + $0x130] sm:$0xff]
      %v239 = vld [vmem:[%s192 + $0x138] sm:$0xff]
      %v240 = vld [vmem:[%s192 + $0x140] sm:$0xff]
      %v241 = vld [vmem:[%s192 + $0x148] sm:$0xff]
      %v242 = vld [vmem:[%s192 + $0x150] sm:$0xff]
      %v243 = vld [vmem:[%s192 + $0x158] sm:$0xff]
      %v244 = vld [vmem:[%s192 + $0x160] sm:$0xff]
      %v245 = vld [vmem:[%s192 + $0x168] sm:$0x1f]
      %v246 = vld [vmem:[%s192 + $0x170] sm:$0x1f]
      %v247 = vld [vmem:[%s192 + $0x178] sm:$0x1f]
      %v248 = vld [vmem:[%s192 + $0x180] sm:$0x1f]
      %v249 = vld [vmem:[%s192 + $0x188] sm:$0x1f]
      %v250 = vld [vmem:[%s192 + $0x190] sm:$0x1f]
      %v251 = vld [vmem:[%s192 + $0x198] sm:$0x1f]
      %v252 = vld [vmem:[%s192 + $0x1a0] sm:$0x1f]
      %v253 = vld [vmem:[%s192 + $0x1a8] sm:$0x1f]
      %vm254 = vcmask 367616
      %v256 = vsel %vm254, %v198, 0
      %v259 = vsel %vm254, %v199, 0
      %vm261 = vcmask 1044480
      %v263 = vsel %vm261, %v245, 0
      %v266 = vsel %vm261, %v246, 0
      %v269 = vsel %vm261, %v247, 0
      %v272 = vsel %vm261, %v248, 0
      %v275 = vsel %vm261, %v249, 0
      %v278 = vsel %vm261, %v250, 0
      %v281 = vsel %vm261, %v251, 0
      %v284 = vsel %vm261, %v252, 0
      %v287 = vsel %vm261, %v253, 0
      %289 = vmatprep.subr.mxu0 0.0
      %290 = vmatpush1.msra.mxu0 0.0
      %291 = vmatprep.subr.mxu0 0.0
      %292 = vmatpush1.msra.mxu0 0.0
      %293 = vmatprep.subr.mxu0 0.0
      %294 = vmatpush1.msra.mxu0 0.0
      %295 = vmatprep.subr.mxu0 0.0
      %296 = vmatpush1.msra.mxu0 0.0
      %297 = vmatprep.subr.mxu0 0.0
      %298 = vmatpush1.msra.mxu0 0.0
      %299 = vmatprep.subr.mxu0 0.0
      %300 = vmatpush1.msra.mxu0 0.0
      %301 = vmatprep.subr.mxu0 0.0
      %302 = vmatpush1.msra.mxu0 0.0
      %303 = vmatprep.subr.mxu0 0.0
      %304 = vmatpush1.msra.mxu0 0.0
      %305 = vmatprep.subr.mxu0 0.0
      %306 = vmatpush1.msra.mxu0 0.0
      %307 = vmatprep.subr.mxu0 0.0
      %308 = vmatpush1.msra.mxu0 0.0
      %309 = vmatprep.subr.mxu0 %v266
      %310 = vmatpush1.msra.mxu0 %v263
      %311 = vmatprep.subr.mxu0 %v237
      %312 = vmatpush1.msra.mxu0 %v236
      %313 = vmatprep.subr.mxu0 %v228
      %314 = vmatpush1.msra.mxu0 %v227
      %315 = vmatprep.subr.mxu0 %v219
      %316 = vmatpush1.msra.mxu0 %v218
      %317 = vmatprep.subr.mxu0 %v210
      %318 = vmatpush1.msra.mxu0 %v209
      %319 = vmatprep.subr.mxu0 %v201
      %320 = vmatpush1.msra.mxu0 %v200
      %321 = vmatprep.subr.mxu0 0.0
      %322 = vmatpush2.msra.mxu0 0.0
      %323 = vmatprep.subr.mxu0 0.0
      %324 = vmatpush2.msra.mxu0 0.0
      %325 = vmatprep.subr.mxu0 0.0
      %326 = vmatpush2.msra.mxu0 0.0
      %327 = vmatprep.subr.mxu0 0.0
      %328 = vmatpush2.msra.mxu0 0.0
      %329 = vmatprep.subr.mxu0 0.0
      %330 = vmatpush2.msra.mxu0 0.0
      %331 = vmatprep.subr.mxu0 0.0
      %332 = vmatpush2.msra.mxu0 0.0
      %333 = vmatprep.subr.mxu0 0.0
      %334 = vmatpush2.msra.mxu0 0.0
      %335 = vmatprep.subr.mxu0 0.0
      %336 = vmatpush2.msra.mxu0 0.0
      %337 = vmatprep.subr.mxu0 0.0
      %338 = vmatpush2.msra.mxu0 0.0
      %339 = vmatprep.subr.mxu0 0.0
      %340 = vmatpush2.msra.mxu0 0.0
      %341 = vmatprep.subr.mxu0 0.0
      %342 = vmatpush2.msra.mxu0 0.0
      %343 = vmatprep.subr.mxu0 0.0
      %344 = vmatpush2.msra.mxu0 0.0
      %345 = vmatprep.subr.mxu0 0.0
      %346 = vmatpush2.msra.mxu0 0.0
      %347 = vmatprep.subr.mxu0 0.0
      %348 = vmatpush2.msra.mxu0 0.0
      %349 = vmatprep.subr.mxu0 0.0
      %350 = vmatpush2.msra.mxu0 0.0
      %351 = vmatprep.subr.mxu0 0.0
      %352 = vmatpush2.msra.mxu0 0.0
      %353 = vmatprep.mubr.f32.mxu0 0.0
      %354 = vmatmul.mubr.f32.gmra.mxu0 %v256
      %v355 = vpop.f32.mrf.mxu0
      %v356 = vadd.f32 3.0, %v355
      %v357 = vpop.f32.mrf.mxu0
      %v358 = vadd.f32 3.0, %v357
      %359 = vmatprep.mubr.f32.mxu0 0.0
      %360 = vmatmul.mubr.f32.gmra.mxu0 %v259
      %v361 = vpop.f32.mrf.mxu0
      %v362 = vadd.f32 3.0, %v361
      %v363 = vpop.f32.mrf.mxu0
      %v364 = vadd.f32 3.0, %v363
      %365 = vdwg.mxu0
      %366 = vmatprep.subr.mxu0 0.0
      %367 = vmatpush1.msra.mxu0 0.0
      %368 = vmatprep.subr.mxu0 0.0
      %369 = vmatpush1.msra.mxu0 0.0
      %370 = vmatprep.subr.mxu0 0.0
      %371 = vmatpush1.msra.mxu0 0.0
      %372 = vmatprep.subr.mxu0 0.0
      %373 = vmatpush1.msra.mxu0 0.0
      %374 = vmatprep.subr.mxu0 0.0
      %375 = vmatpush1.msra.mxu0 0.0
      %376 = vmatprep.subr.mxu0 0.0
      %377 = vmatpush1.msra.mxu0 0.0
      %378 = vmatprep.subr.mxu0 0.0
      %379 = vmatpush1.msra.mxu0 0.0
      %380 = vmatprep.subr.mxu0 0.0
      %381 = vmatpush1.msra.mxu0 0.0
      %382 = vmatprep.subr.mxu0 0.0
      %383 = vmatpush1.msra.mxu0 0.0
      %384 = vmatprep.subr.mxu0 0.0
      %385 = vmatpush1.msra.mxu0 0.0
      %386 = vmatprep.subr.mxu0 %v272
      %387 = vmatpush1.msra.mxu0 %v269
      %388 = vmatprep.subr.mxu0 %v239
      %389 = vmatpush1.msra.mxu0 %v238
      %390 = vmatprep.subr.mxu0 %v230
      %391 = vmatpush1.msra.mxu0 %v229
      %392 = vmatprep.subr.mxu0 %v221
      %393 = vmatpush1.msra.mxu0 %v220
      %394 = vmatprep.subr.mxu0 %v212
      %395 = vmatpush1.msra.mxu0 %v211
      %396 = vmatprep.subr.mxu0 %v203
      %397 = vmatpush1.msra.mxu0 %v202
      %398 = vmatprep.subr.mxu0 0.0
      %399 = vmatpush2.msra.mxu0 0.0
      %400 = vmatprep.subr.mxu0 0.0
      %401 = vmatpush2.msra.mxu0 0.0
      %402 = vmatprep.subr.mxu0 0.0
      %403 = vmatpush2.msra.mxu0 0.0
      %404 = vmatprep.subr.mxu0 0.0
      %405 = vmatpush2.msra.mxu0 0.0
      %406 = vmatprep.subr.mxu0 0.0
      %407 = vmatpush2.msra.mxu0 0.0
      %408 = vmatprep.subr.mxu0 0.0
      %409 = vmatpush2.msra.mxu0 0.0
      %410 = vmatprep.subr.mxu0 0.0
      %411 = vmatpush2.msra.mxu0 0.0
      %412 = vmatprep.subr.mxu0 0.0
      %413 = vmatpush2.msra.mxu0 0.0
      %414 = vmatprep.subr.mxu0 0.0
      %415 = vmatpush2.msra.mxu0 0.0
      %416 = vmatprep.subr.mxu0 0.0
      %417 = vmatpush2.msra.mxu0 0.0
      %418 = vmatprep.subr.mxu0 0.0
      %419 = vmatpush2.msra.mxu0 0.0
      %420 = vmatprep.subr.mxu0 0.0
      %421 = vmatpush2.msra.mxu0 0.0
      %422 = vmatprep.subr.mxu0 0.0
      %423 = vmatpush2.msra.mxu0 0.0
      %424 = vmatprep.subr.mxu0 0.0
      %425 = vmatpush2.msra.mxu0 0.0
      %426 = vmatprep.subr.mxu0 0.0
      %427 = vmatpush2.msra.mxu0 0.0
      %428 = vmatprep.subr.mxu0 0.0
      %429 = vmatpush2.msra.mxu0 0.0
      %430 = vmatprep.mubr.f32.mxu0 0.0
      %431 = vmatmul.mubr.f32.gmra.mxu0 %v256
      %v432 = vpop.f32.mrf.mxu0
      %v433 = vadd.f32 3.0, %v432
      %v434 = vpop.f32.mrf.mxu0
      %v435 = vadd.f32 3.0, %v434
      %436 = vmatprep.mubr.f32.mxu0 0.0
      %437 = vmatmul.mubr.f32.gmra.mxu0 %v259
      %v438 = vpop.f32.mrf.mxu0
      %v439 = vadd.f32 3.0, %v438
      %v440 = vpop.f32.mrf.mxu0
      %v441 = vadd.f32 3.0, %v440
      %442 = vdwg.mxu0
      %443 = vmatprep.subr.mxu0 0.0
      %444 = vmatpush1.msra.mxu0 0.0
      %445 = vmatprep.subr.mxu0 0.0
      %446 = vmatpush1.msra.mxu0 0.0
      %447 = vmatprep.subr.mxu0 0.0
      %448 = vmatpush1.msra.mxu0 0.0
      %449 = vmatprep.subr.mxu0 0.0
      %450 = vmatpush1.msra.mxu0 0.0
      %451 = vmatprep.subr.mxu0 0.0
      %452 = vmatpush1.msra.mxu0 0.0
      %453 = vmatprep.subr.mxu0 0.0
      %454 = vmatpush1.msra.mxu0 0.0
      %455 = vmatprep.subr.mxu0 0.0
      %456 = vmatpush1.msra.mxu0 0.0
      %457 = vmatprep.subr.mxu0 0.0
      %458 = vmatpush1.msra.mxu0 0.0
      %459 = vmatprep.subr.mxu0 0.0
      %460 = vmatpush1.msra.mxu0 0.0
      %461 = vmatprep.subr.mxu0 0.0
      %462 = vmatpush1.msra.mxu0 0.0
      %463 = vmatprep.subr.mxu0 %v278
      %464 = vmatpush1.msra.mxu0 %v275
      %465 = vmatprep.subr.mxu0 %v241
      %466 = vmatpush1.msra.mxu0 %v240
      %467 = vmatprep.subr.mxu0 %v232
      %468 = vmatpush1.msra.mxu0 %v231
      %469 = vmatprep.subr.mxu0 %v223
      %470 = vmatpush1.msra.mxu0 %v222
      %471 = vmatprep.subr.mxu0 %v214
      %472 = vmatpush1.msra.mxu0 %v213
      %473 = vmatprep.subr.mxu0 %v205
      %474 = vmatpush1.msra.mxu0 %v204
      %475 = vmatprep.subr.mxu0 0.0
      %476 = vmatpush2.msra.mxu0 0.0
      %477 = vmatprep.subr.mxu0 0.0
      %478 = vmatpush2.msra.mxu0 0.0
      %479 = vmatprep.subr.mxu0 0.0
      %480 = vmatpush2.msra.mxu0 0.0
      %481 = vmatprep.subr.mxu0 0.0
      %482 = vmatpush2.msra.mxu0 0.0
      %483 = vmatprep.subr.mxu0 0.0
      %484 = vmatpush2.msra.mxu0 0.0
      %485 = vmatprep.subr.mxu0 0.0
      %486 = vmatpush2.msra.mxu0 0.0
      %487 = vmatprep.subr.mxu0 0.0
      %488 = vmatpush2.msra.mxu0 0.0
      %489 = vmatprep.subr.mxu0 0.0
      %490 = vmatpush2.msra.mxu0 0.0
      %491 = vmatprep.subr.mxu0 0.0
      %492 = vmatpush2.msra.mxu0 0.0
      %493 = vmatprep.subr.mxu0 0.0
      %494 = vmatpush2.msra.mxu0 0.0
      %495 = vmatprep.subr.mxu0 0.0
      %496 = vmatpush2.msra.mxu0 0.0
      %497 = vmatprep.subr.mxu0 0.0
      %498 = vmatpush2.msra.mxu0 0.0
      %499 = vmatprep.subr.mxu0 0.0
      %500 = vmatpush2.msra.mxu0 0.0
      %501 = vmatprep.subr.mxu0 0.0
      %502 = vmatpush2.msra.mxu0 0.0
      %503 = vmatprep.subr.mxu0 0.0
      %504 = vmatpush2.msra.mxu0 0.0
      %505 = vmatprep.subr.mxu0 0.0
      %506 = vmatpush2.msra.mxu0 0.0
      %507 = vmatprep.mubr.f32.mxu0 0.0
      %508 = vmatmul.mubr.f32.gmra.mxu0 %v256
      %v509 = vpop.f32.mrf.mxu0
      %v510 = vadd.f32 3.0, %v509
      %v511 = vpop.f32.mrf.mxu0
      %v512 = vadd.f32 3.0, %v511
      %513 = vmatprep.mubr.f32.mxu0 0.0
      %514 = vmatmul.mubr.f32.gmra.mxu0 %v259
      %v515 = vpop.f32.mrf.mxu0
      %v516 = vadd.f32 3.0, %v515
      %v517 = vpop.f32.mrf.mxu0
      %v518 = vadd.f32 3.0, %v517
      %519 = vdwg.mxu0
      %520 = vmatprep.subr.mxu0 0.0
      %521 = vmatpush1.msra.mxu0 0.0
      %522 = vmatprep.subr.mxu0 0.0
      %523 = vmatpush1.msra.mxu0 0.0
      %524 = vmatprep.subr.mxu0 0.0
      %525 = vmatpush1.msra.mxu0 0.0
      %526 = vmatprep.subr.mxu0 0.0
      %527 = vmatpush1.msra.mxu0 0.0
      %528 = vmatprep.subr.mxu0 0.0
      %529 = vmatpush1.msra.mxu0 0.0
      %530 = vmatprep.subr.mxu0 0.0
      %531 = vmatpush1.msra.mxu0 0.0
      %532 = vmatprep.subr.mxu0 0.0
      %533 = vmatpush1.msra.mxu0 0.0
      %534 = vmatprep.subr.mxu0 0.0
      %535 = vmatpush1.msra.mxu0 0.0
      %536 = vmatprep.subr.mxu0 0.0
      %537 = vmatpush1.msra.mxu0 0.0
      %538 = vmatprep.subr.mxu0 0.0
      %539 = vmatpush1.msra.mxu0 0.0
      %540 = vmatprep.subr.mxu0 %v284
      %541 = vmatpush1.msra.mxu0 %v281
      %542 = vmatprep.subr.mxu0 %v243
      %543 = vmatpush1.msra.mxu0 %v242
      %544 = vmatprep.subr.mxu0 %v234
      %545 = vmatpush1.msra.mxu0 %v233
      %546 = vmatprep.subr.mxu0 %v225
      %547 = vmatpush1.msra.mxu0 %v224
      %548 = vmatprep.subr.mxu0 %v216
      %549 = vmatpush1.msra.mxu0 %v215
      %550 = vmatprep.subr.mxu0 %v207
      %551 = vmatpush1.msra.mxu0 %v206
      %552 = vmatprep.subr.mxu0 0.0
      %553 = vmatpush2.msra.mxu0 0.0
      %554 = vmatprep.subr.mxu0 0.0
      %555 = vmatpush2.msra.mxu0 0.0
      %556 = vmatprep.subr.mxu0 0.0
      %557 = vmatpush2.msra.mxu0 0.0
      %558 = vmatprep.subr.mxu0 0.0
      %559 = vmatpush2.msra.mxu0 0.0
      %560 = vmatprep.subr.mxu0 0.0
      %561 = vmatpush2.msra.mxu0 0.0
      %562 = vmatprep.subr.mxu0 0.0
      %563 = vmatpush2.msra.mxu0 0.0
      %564 = vmatprep.subr.mxu0 0.0
      %565 = vmatpush2.msra.mxu0 0.0
      %566 = vmatprep.subr.mxu0 0.0
      %567 = vmatpush2.msra.mxu0 0.0
      %568 = vmatprep.subr.mxu0 0.0
      %569 = vmatpush2.msra.mxu0 0.0
      %570 = vmatprep.subr.mxu0 0.0
      %571 = vmatpush2.msra.mxu0 0.0
      %572 = vmatprep.subr.mxu0 0.0
      %573 = vmatpush2.msra.mxu0 0.0
      %574 = vmatprep.subr.mxu0 0.0
      %575 = vmatpush2.msra.mxu0 0.0
      %576 = vmatprep.subr.mxu0 0.0
      %577 = vmatpush2.msra.mxu0 0.0
      %578 = vmatprep.subr.mxu0 0.0
      %579 = vmatpush2.msra.mxu0 0.0
      %580 = vmatprep.subr.mxu0 0.0
      %581 = vmatpush2.msra.mxu0 0.0
      %582 = vmatprep.subr.mxu0 0.0
      %583 = vmatpush2.msra.mxu0 0.0
      %584 = vmatprep.mubr.f32.mxu0 0.0
      %585 = vmatmul.mubr.f32.gmra.mxu0 %v256
      %v586 = vpop.f32.mrf.mxu0
      %v587 = vadd.f32 3.0, %v586
      %v588 = vpop.f32.mrf.mxu0
      %v589 = vadd.f32 3.0, %v588
      %590 = vmatprep.mubr.f32.mxu0 0.0
      %591 = vmatmul.mubr.f32.gmra.mxu0 %v259
      %v592 = vpop.f32.mrf.mxu0
      %v593 = vadd.f32 3.0, %v592
      %v594 = vpop.f32.mrf.mxu0
      %v595 = vadd.f32 3.0, %v594
      %596 = vdwg.mxu0
      %597 = vmatprep.subr.mxu0 0.0
      %598 = vmatpush1.msra.mxu0 0.0
      %599 = vmatprep.subr.mxu0 0.0
      %600 = vmatpush1.msra.mxu0 0.0
      %601 = vmatprep.subr.mxu0 0.0
      %602 = vmatpush1.msra.mxu0 0.0
      %603 = vmatprep.subr.mxu0 0.0
      %604 = vmatpush1.msra.mxu0 0.0
      %605 = vmatprep.subr.mxu0 0.0
      %606 = vmatpush1.msra.mxu0 0.0
      %607 = vmatprep.subr.mxu0 0.0
      %608 = vmatpush1.msra.mxu0 0.0
      %609 = vmatprep.subr.mxu0 0.0
      %610 = vmatpush1.msra.mxu0 0.0
      %611 = vmatprep.subr.mxu0 0.0
      %612 = vmatpush1.msra.mxu0 0.0
      %613 = vmatprep.subr.mxu0 0.0
      %614 = vmatpush1.msra.mxu0 0.0
      %615 = vmatprep.subr.mxu0 0.0
      %616 = vmatpush1.msra.mxu0 0.0
      %617 = vmatprep.subr.mxu0 0.0
      %618 = vmatpush1.msra.mxu0 %v287
      %619 = vmatprep.subr.mxu0 0.0
      %620 = vmatpush1.msra.mxu0 %v244
      %621 = vmatprep.subr.mxu0 0.0
      %622 = vmatpush1.msra.mxu0 %v235
      %623 = vmatprep.subr.mxu0 0.0
      %624 = vmatpush1.msra.mxu0 %v226
      %625 = vmatprep.subr.mxu0 0.0
      %626 = vmatpush1.msra.mxu0 %v217
      %627 = vmatprep.subr.mxu0 0.0
      %628 = vmatpush1.msra.mxu0 %v208
      %629 = vmatprep.subr.mxu0 0.0
      %630 = vmatpush2.msra.mxu0 0.0
      %631 = vmatprep.subr.mxu0 0.0
      %632 = vmatpush2.msra.mxu0 0.0
      %633 = vmatprep.subr.mxu0 0.0
      %634 = vmatpush2.msra.mxu0 0.0
      %635 = vmatprep.subr.mxu0 0.0
      %636 = vmatpush2.msra.mxu0 0.0
      %637 = vmatprep.subr.mxu0 0.0
      %638 = vmatpush2.msra.mxu0 0.0
      %639 = vmatprep.subr.mxu0 0.0
      %640 = vmatpush2.msra.mxu0 0.0
      %641 = vmatprep.subr.mxu0 0.0
      %642 = vmatpush2.msra.mxu0 0.0
      %643 = vmatprep.subr.mxu0 0.0
      %644 = vmatpush2.msra.mxu0 0.0
      %645 = vmatprep.subr.mxu0 0.0
      %646 = vmatpush2.msra.mxu0 0.0
      %647 = vmatprep.subr.mxu0 0.0
      %648 = vmatpush2.msra.mxu0 0.0
      %649 = vmatprep.subr.mxu0 0.0
      %650 = vmatpush2.msra.mxu0 0.0
      %651 = vmatprep.subr.mxu0 0.0
      %652 = vmatpush2.msra.mxu0 0.0
      %653 = vmatprep.subr.mxu0 0.0
      %654 = vmatpush2.msra.mxu0 0.0
      %655 = vmatprep.subr.mxu0 0.0
      %656 = vmatpush2.msra.mxu0 0.0
      %657 = vmatprep.subr.mxu0 0.0
      %658 = vmatpush2.msra.mxu0 0.0
      %659 = vmatprep.subr.mxu0 0.0
      %660 = vmatpush2.msra.mxu0 0.0
      %661 = vmatprep.mubr.f32.mxu0 0.0
      %662 = vmatmul.mubr.f32.gmra.mxu0 %v256
      %v663 = vpop.f32.mrf.mxu0
      %v664 = vadd.f32 3.0, %v663
      %v665 = vpop.f32.mrf.mxu0
      %666 = vmatprep.mubr.f32.mxu0 0.0
      %667 = vmatmul.mubr.f32.gmra.mxu0 %v259
      %v668 = vpop.f32.mrf.mxu0
      %v669 = vadd.f32 3.0, %v668
      %v670 = vpop.f32.mrf.mxu0
      %671 = vdwg.mxu0
      %v672 = vmax.f32 %v356, 0.0
      %v673 = vmax.f32 %v358, 0.0
      %v674 = vmax.f32 %v433, 0.0
      %v675 = vmax.f32 %v435, 0.0
      %v676 = vmax.f32 %v510, 0.0
      %v677 = vmax.f32 %v512, 0.0
      %v678 = vmax.f32 %v587, 0.0
      %v679 = vmax.f32 %v589, 0.0
      %v680 = vmax.f32 %v664, 0.0
      %v681 = vmax.f32 %v362, 0.0
      %v682 = vmax.f32 %v364, 0.0
      %v683 = vmax.f32 %v439, 0.0
      %v684 = vmax.f32 %v441, 0.0
      %v685 = vmax.f32 %v516, 0.0
      %v686 = vmax.f32 %v518, 0.0
      %v687 = vmax.f32 %v593, 0.0
      %v688 = vmax.f32 %v595, 0.0
      %v689 = vmax.f32 %v669, 0.0
      %v690 = vmin.f32 %v672, 6.0
      %v691 = vmin.f32 %v673, 6.0
      %v692 = vmin.f32 %v674, 6.0
      %v693 = vmin.f32 %v675, 6.0
      %v694 = vmin.f32 %v676, 6.0
      %v695 = vmin.f32 %v677, 6.0
      %v696 = vmin.f32 %v678, 6.0
      %v697 = vmin.f32 %v679, 6.0
      %v698 = vmin.f32 %v680, 6.0
      %v699 = vmin.f32 %v681, 6.0
      %v700 = vmin.f32 %v682, 6.0
      %v701 = vmin.f32 %v683, 6.0
      %v702 = vmin.f32 %v684, 6.0
      %v703 = vmin.f32 %v685, 6.0
      %v704 = vmin.f32 %v686, 6.0
      %v705 = vmin.f32 %v687, 6.0
      %v706 = vmin.f32 %v688, 6.0
      %v707 = vmin.f32 %v689, 6.0
      %v708 = vmul.f32 %v690, 0.16666667
      %v709 = vmul.f32 %v691, 0.16666667
      %v710 = vmul.f32 %v692, 0.16666667
      %v711 = vmul.f32 %v693, 0.16666667
      %v712 = vmul.f32 %v694, 0.16666667
      %v713 = vmul.f32 %v695, 0.16666667
      %v714 = vmul.f32 %v696, 0.16666667
      %v715 = vmul.f32 %v697, 0.16666667
      %v716 = vmul.f32 %v698, 0.16666667
      %v717 = vmul.f32 %v699, 0.16666667
      %v718 = vmul.f32 %v700, 0.16666667
      %v719 = vmul.f32 %v701, 0.16666667
      %v720 = vmul.f32 %v702, 0.16666667
      %v721 = vmul.f32 %v703, 0.16666667
      %v722 = vmul.f32 %v704, 0.16666667
      %v723 = vmul.f32 %v705, 0.16666667
      %v724 = vmul.f32 %v706, 0.16666667
      %v725 = vmul.f32 %v707, 0.16666667
      %v726 = vsel %vm261, %v708, 0.0
      %v727 = vsel %vm261, %v709, 0.0
      %v728 = vadd.f32 %v726, %v727
      %v729 = vsel %vm261, %v710, 0.0
      %v730 = vadd.f32 %v728, %v729
      %v731 = vsel %vm261, %v711, 0.0
      %v732 = vadd.f32 %v730, %v731
      %v733 = vsel %vm261, %v712, 0.0
      %v734 = vadd.f32 %v732, %v733
      %v735 = vsel %vm261, %v713, 0.0
      %v736 = vadd.f32 %v734, %v735
      %v737 = vsel %vm261, %v714, 0.0
      %v738 = vadd.f32 %v736, %v737
      %v739 = vsel %vm261, %v715, 0.0
      %v740 = vadd.f32 %v738, %v739
      %vm741 = vcmask 528384
      %v742 = vsel %vm741, %v716, 0.0
      %v743 = vadd.f32 %v740, %v742
      %744 = vadd.xlane.f32.xlu0 %v743
      %v745 = vpop.xlane.xlu0 %744
      %v746 = vrot.slane %v745, 4
      %v747 = vadd.f32 %v745, %v746
      %v748 = vrot.slane %v747, 2
      %v749 = vadd.f32 %v747, %v748
      %v750 = vrot.slane %v749, 1
      %v751 = vadd.f32 %v749, %v750
      %s752 = vtos %v751
      %s753 = smul.f32 %s752, 0.00018365473
      %v754 = vstv %s753
      %v755 = vsub.f32 %v708, %v754
      %v756 = vsub.f32 %v709, %v754
      %v757 = vsub.f32 %v710, %v754
      %v758 = vsub.f32 %v711, %v754
      %v759 = vsub.f32 %v712, %v754
      %v760 = vsub.f32 %v713, %v754
      %v761 = vsub.f32 %v714, %v754
      %v762 = vsub.f32 %v715, %v754
      %v763 = vsub.f32 %v716, %v754
      %v764 = vmul.f32 %v755, %v755
      %v765 = vmul.f32 %v756, %v756
      %v766 = vmul.f32 %v757, %v757
      %v767 = vmul.f32 %v758, %v758
      %v768 = vmul.f32 %v759, %v759
      %v769 = vmul.f32 %v760, %v760
      %v770 = vmul.f32 %v761, %v761
      %v771 = vmul.f32 %v762, %v762
      %v772 = vmul.f32 %v763, %v763
      %v773 = vsel %vm261, %v764, 0.0
      %v774 = vsel %vm261, %v765, 0.0
      %v775 = vadd.f32 %v773, %v774
      %v776 = vsel %vm261, %v766, 0.0
      %v777 = vadd.f32 %v775, %v776
      %v778 = vsel %vm261, %v767, 0.0
      %v779 = vadd.f32 %v777, %v778
      %v780 = vsel %vm261, %v768, 0.0
      %v781 = vadd.f32 %v779, %v780
      %v782 = vsel %vm261, %v769, 0.0
      %v783 = vadd.f32 %v781, %v782
      %v784 = vsel %vm261, %v770, 0.0
      %v785 = vadd.f32 %v783, %v784
      %v786 = vsel %vm261, %v771, 0.0
      %v787 = vadd.f32 %v785, %v786
      %v788 = vsel %vm741, %v772, 0.0
      %v789 = vadd.f32 %v787, %v788
      %790 = vadd.xlane.f32.xlu0 %v789
      %v791 = vpop.xlane.xlu0 %790
      %v792 = vrot.slane %v791, 4
      %v793 = vadd.f32 %v791, %v792
      %v794 = vrot.slane %v793, 2
      %v795 = vadd.f32 %v793, %v794
      %v796 = vrot.slane %v795, 1
      %v797 = vadd.f32 %v795, %v796
      %s798 = vtos %v797
      %s799 = smul.f32 %s798, 0.00018365473
      %s800 = sadd.f32 %s799, 1e-05
      %v801 = vstv %s800
      %v802 = vrsqrt.pop %v801
      %s803 = vtos %v802
      %v804 = vld [vmem:[%s2] sm:$0x1f]
      %v805 = vld [vmem:[%s3] sm:$0x1f]
      %v806 = vstv %s803
      %v807 = vmul.f32 %v755, %v806
      %v808 = vmul.f32 %v756, %v806
      %v809 = vmul.f32 %v757, %v806
      %v810 = vmul.f32 %v758, %v806
      %v811 = vmul.f32 %v759, %v806
      %v812 = vmul.f32 %v760, %v806
      %v813 = vmul.f32 %v761, %v806
      %v814 = vmul.f32 %v762, %v806
      %v815 = vmul.f32 %v763, %v806
      %817 = vset.pattern.permute.xlu0 0
      %818 = vperm.xlu0 %817, %v804
      %v819 = vpop.permute.xlu0 %818
      %v821 = vmul.f32 %v807, %v819
      %v822 = vmul.f32 %v808, %v819
      %v823 = vmul.f32 %v809, %v819
      %v824 = vmul.f32 %v810, %v819
      %v825 = vmul.f32 %v811, %v819
      %v826 = vmul.f32 %v812, %v819
      %v827 = vmul.f32 %v813, %v819
      %v828 = vmul.f32 %v814, %v819
      %v829 = vmul.f32 %v815, %v819
      %831 = vset.pattern.permute.xlu0 0
      %832 = vperm.xlu0 %831, %v805
      %v833 = vpop.permute.xlu0 %832
      %v835 = vadd.f32 %v821, %v833
      %v836 = vadd.f32 %v822, %v833
      %v837 = vadd.f32 %v823, %v833
      %v838 = vadd.f32 %v824, %v833
      %v839 = vadd.f32 %v825, %v833
      %v840 = vadd.f32 %v826, %v833
      %v841 = vadd.f32 %v827, %v833
      %v842 = vadd.f32 %v828, %v833
      %v843 = vadd.f32 %v829, %v833
      %vm862 = vcmask 1042432
      %v863 = vrot.slane %v708, 5
      %v864 = vrot.slane %v717, 5
      %v865 = vsel %vm862, %v863, %v864
      %v866 = vrot.slane %v709, 5
      %v867 = vrot.slane %v718, 5
      %v868 = vsel %vm862, %v866, %v867
      %v869 = vrot.slane %v710, 5
      %v870 = vrot.slane %v719, 5
      %v871 = vsel %vm862, %v869, %v870
      %v872 = vrot.slane %v711, 5
      %v873 = vrot.slane %v720, 5
      %v874 = vsel %vm862, %v872, %v873
      %v875 = vrot.slane %v712, 5
      %v876 = vrot.slane %v721, 5
      %v877 = vsel %vm862, %v875, %v876
      %v878 = vrot.slane %v713, 5
      %v879 = vrot.slane %v722, 5
      %v880 = vsel %vm862, %v878, %v879
      %v881 = vrot.slane %v714, 5
      %v882 = vrot.slane %v723, 5
      %v883 = vsel %vm862, %v881, %v882
      %v884 = vrot.slane %v715, 5
      %v885 = vrot.slane %v724, 5
      %v886 = vsel %vm862, %v884, %v885
      %v887 = vrot.slane %v716, 5
      %v888 = vrot.slane %v725, 5
      %v889 = vsel %vm862, %v887, %v888
      %v899 = vsel %vm261, %v865, 0.0
      %v900 = vsel %vm261, %v868, 0.0
      %v901 = vadd.f32 %v899, %v900
      %v902 = vsel %vm261, %v871, 0.0
      %v903 = vadd.f32 %v901, %v902
      %v904 = vsel %vm261, %v874, 0.0
      %v905 = vadd.f32 %v903, %v904
      %v906 = vsel %vm261, %v877, 0.0
      %v907 = vadd.f32 %v905, %v906
      %v908 = vsel %vm261, %v880, 0.0
      %v909 = vadd.f32 %v907, %v908
      %v910 = vsel %vm261, %v883, 0.0
      %v911 = vadd.f32 %v909, %v910
      %v912 = vsel %vm261, %v886, 0.0
      %v913 = vadd.f32 %v911, %v912
      %v914 = vsel %vm741, %v889, 0.0
      %v915 = vadd.f32 %v913, %v914
      %916 = vadd.xlane.f32.xlu0 %v915
      %v917 = vpop.xlane.xlu0 %916
      %v918 = vrot.slane %v917, 4
      %v919 = vadd.f32 %v917, %v918
      %v920 = vrot.slane %v919, 2
      %v921 = vadd.f32 %v919, %v920
      %v922 = vrot.slane %v921, 1
      %v923 = vadd.f32 %v921, %v922
      %s924 = vtos %v923
      %s925 = smul.f32 %s924, 0.00018365473
      %v926 = vstv %s925
      %v927 = vsub.f32 %v708, %v926
      %v928 = vsub.f32 %v709, %v926
      %v929 = vsub.f32 %v710, %v926
      %v930 = vsub.f32 %v711, %v926
      %v931 = vsub.f32 %v712, %v926
      %v932 = vsub.f32 %v713, %v926
      %v933 = vsub.f32 %v714, %v926
      %v934 = vsub.f32 %v715, %v926
      %v935 = vsub.f32 %v716, %v926
      %v936 = vsub.f32 %v717, %v926
      %v937 = vsub.f32 %v718, %v926
      %v938 = vsub.f32 %v719, %v926
      %v939 = vsub.f32 %v720, %v926
      %v940 = vsub.f32 %v721, %v926
      %v941 = vsub.f32 %v722, %v926
      %v942 = vsub.f32 %v723, %v926
      %v943 = vsub.f32 %v724, %v926
      %v944 = vsub.f32 %v725, %v926
      %v945 = vmul.f32 %v927, %v927
      %v946 = vmul.f32 %v928, %v928
      %v947 = vmul.f32 %v929, %v929
      %v948 = vmul.f32 %v930, %v930
      %v949 = vmul.f32 %v931, %v931
      %v950 = vmul.f32 %v932, %v932
      %v951 = vmul.f32 %v933, %v933
      %v952 = vmul.f32 %v934, %v934
      %v953 = vmul.f32 %v935, %v935
      %v954 = vmul.f32 %v936, %v936
      %v955 = vmul.f32 %v937, %v937
      %v956 = vmul.f32 %v938, %v938
      %v957 = vmul.f32 %v939, %v939
      %v958 = vmul.f32 %v940, %v940
      %v959 = vmul.f32 %v941, %v941
      %v960 = vmul.f32 %v942, %v942
      %v961 = vmul.f32 %v943, %v943
      %v962 = vmul.f32 %v944, %v944
      %v981 = vrot.slane %v945, 5
      %v982 = vrot.slane %v954, 5
      %v983 = vsel %vm862, %v981, %v982
      %v984 = vrot.slane %v946, 5
      %v985 = vrot.slane %v955, 5
      %v986 = vsel %vm862, %v984, %v985
      %v987 = vrot.slane %v947, 5
      %v988 = vrot.slane %v956, 5
      %v989 = vsel %vm862, %v987, %v988
      %v990 = vrot.slane %v948, 5
      %v991 = vrot.slane %v957, 5
      %v992 = vsel %vm862, %v990, %v991
      %v993 = vrot.slane %v949, 5
      %v994 = vrot.slane %v958, 5
      %v995 = vsel %vm862, %v993, %v994
      %v996 = vrot.slane %v950, 5
      %v997 = vrot.slane %v959, 5
      %v998 = vsel %vm862, %v996, %v997
      %v999 = vrot.slane %v951, 5
      %v1000 = vrot.slane %v960, 5
      %v1001 = vsel %vm862, %v999, %v1000
      %v1002 = vrot.slane %v952, 5
      %v1003 = vrot.slane %v961, 5
      %v1004 = vsel %vm862, %v1002, %v1003
      %v1005 = vrot.slane %v953, 5
      %v1006 = vrot.slane %v962, 5
      %v1007 = vsel %vm862, %v1005, %v1006
      %v1017 = vsel %vm261, %v983, 0.0
      %v1018 = vsel %vm261, %v986, 0.0
      %v1019 = vadd.f32 %v1017, %v1018
      %v1020 = vsel %vm261, %v989, 0.0
      %v1021 = vadd.f32 %v1019, %v1020
      %v1022 = vsel %vm261, %v992, 0.0
      %v1023 = vadd.f32 %v1021, %v1022
      %v1024 = vsel %vm261, %v995, 0.0
      %v1025 = vadd.f32 %v1023, %v1024
      %v1026 = vsel %vm261, %v998, 0.0
      %v1027 = vadd.f32 %v1025, %v1026
      %v1028 = vsel %vm261, %v1001, 0.0
      %v1029 = vadd.f32 %v1027, %v1028
      %v1030 = vsel %vm261, %v1004, 0.0
      %v1031 = vadd.f32 %v1029, %v1030
      %v1032 = vsel %vm741, %v1007, 0.0
      %v1033 = vadd.f32 %v1031, %v1032
      %1034 = vadd.xlane.f32.xlu0 %v1033
      %v1035 = vpop.xlane.xlu0 %1034
      %v1036 = vrot.slane %v1035, 4
      %v1037 = vadd.f32 %v1035, %v1036
      %v1038 = vrot.slane %v1037, 2
      %v1039 = vadd.f32 %v1037, %v1038
      %v1040 = vrot.slane %v1039, 1
      %v1041 = vadd.f32 %v1039, %v1040
      %s1042 = vtos %v1041
      %s1043 = smul.f32 %s1042, 0.00018365473
      %s1044 = sadd.f32 %s1043, 1e-05
      %v1045 = vstv %s1044
      %v1046 = vrsqrt.pop %v1045
      %s1047 = vtos %v1046
      %v1048 = vld [vmem:[%s2 + $0x5] sm:$0x1f]
      %v1049 = vld [vmem:[%s3 + $0x5] sm:$0x1f]
      %v1050 = vstv %s1047
      %v1051 = vmul.f32 %v927, %v1050
      %v1052 = vmul.f32 %v928, %v1050
      %v1053 = vmul.f32 %v929, %v1050
      %v1054 = vmul.f32 %v930, %v1050
      %v1055 = vmul.f32 %v931, %v1050
      %v1056 = vmul.f32 %v932, %v1050
      %v1057 = vmul.f32 %v933, %v1050
      %v1058 = vmul.f32 %v934, %v1050
      %v1059 = vmul.f32 %v935, %v1050
      %v1060 = vmul.f32 %v936, %v1050
      %v1061 = vmul.f32 %v937, %v1050
      %v1062 = vmul.f32 %v938, %v1050
      %v1063 = vmul.f32 %v939, %v1050
      %v1064 = vmul.f32 %v940, %v1050
      %v1065 = vmul.f32 %v941, %v1050
      %v1066 = vmul.f32 %v942, %v1050
      %v1067 = vmul.f32 %v943, %v1050
      %v1068 = vmul.f32 %v944, %v1050
      %1070 = vset.pattern.permute.xlu0 0
      %1071 = vperm.xlu0 %1070, %v1048
      %v1072 = vpop.permute.xlu0 %1071
      %v1073 = vrot.slane %v1072, 3
      %v1075 = vmul.f32 %v1051, %v1073
      %v1076 = vmul.f32 %v1052, %v1073
      %v1077 = vmul.f32 %v1053, %v1073
      %v1078 = vmul.f32 %v1054, %v1073
      %v1079 = vmul.f32 %v1055, %v1073
      %v1080 = vmul.f32 %v1056, %v1073
      %v1081 = vmul.f32 %v1057, %v1073
      %v1082 = vmul.f32 %v1058, %v1073
      %v1083 = vmul.f32 %v1059, %v1073
      %v1084 = vmul.f32 %v1060, %v1073
      %v1085 = vmul.f32 %v1061, %v1073
      %v1086 = vmul.f32 %v1062, %v1073
      %v1087 = vmul.f32 %v1063, %v1073
      %v1088 = vmul.f32 %v1064, %v1073
      %v1089 = vmul.f32 %v1065, %v1073
      %v1090 = vmul.f32 %v1066, %v1073
      %v1091 = vmul.f32 %v1067, %v1073
      %v1092 = vmul.f32 %v1068, %v1073
      %1094 = vset.pattern.permute.xlu0 0
      %1095 = vperm.xlu0 %1094, %v1049
      %v1096 = vpop.permute.xlu0 %1095
      %v1097 = vrot.slane %v1096, 3
      %v1099 = vadd.f32 %v1075, %v1097
      %v1100 = vadd.f32 %v1076, %v1097
      %v1101 = vadd.f32 %v1077, %v1097
      %v1102 = vadd.f32 %v1078, %v1097
      %v1103 = vadd.f32 %v1079, %v1097
      %v1104 = vadd.f32 %v1080, %v1097
      %v1105 = vadd.f32 %v1081, %v1097
      %v1106 = vadd.f32 %v1082, %v1097
      %v1107 = vadd.f32 %v1083, %v1097
      %v1108 = vadd.f32 %v1084, %v1097
      %v1109 = vadd.f32 %v1085, %v1097
      %v1110 = vadd.f32 %v1086, %v1097
      %v1111 = vadd.f32 %v1087, %v1097
      %v1112 = vadd.f32 %v1088, %v1097
      %v1113 = vadd.f32 %v1089, %v1097
      %v1114 = vadd.f32 %v1090, %v1097
      %v1115 = vadd.f32 %v1091, %v1097
      %v1116 = vadd.f32 %v1092, %v1097
      %v1117 = vsel %vm261, %v835, %v1099
      %v1118 = vsel %vm261, %v836, %v1100
      %v1119 = vsel %vm261, %v837, %v1101
      %v1120 = vsel %vm261, %v838, %v1102
      %v1121 = vsel %vm261, %v839, %v1103
      %v1122 = vsel %vm261, %v840, %v1104
      %v1123 = vsel %vm261, %v841, %v1105
      %v1124 = vsel %vm261, %v842, %v1106
      %v1125 = vsel %vm261, %v843, %v1107
      %1126 = vst [vmem:[%s197] sm:$0xff] %v1117
      %1127 = vst [vmem:[%s197 + $0x8] sm:$0xff] %v1118
      %1128 = vst [vmem:[%s197 + $0x10] sm:$0xff] %v1119
      %1129 = vst [vmem:[%s197 + $0x18] sm:$0xff] %v1120
      %1130 = vst [vmem:[%s197 + $0x20] sm:$0xff] %v1121
      %1131 = vst [vmem:[%s197 + $0x28] sm:$0xff] %v1122
      %1132 = vst [vmem:[%s197 + $0x30] sm:$0xff] %v1123
      %1133 = vst [vmem:[%s197 + $0x38] sm:$0xff] %v1124
      %vm1134 = vcmask 531456
      %1135 = vst.msk [vmem:[%s197 + $0x40] sm:$0xff] %vm1134, %v1125
      %1136 = vst [vmem:[%s197 + $0x48] sm:$0x3] %v1108
      %1137 = vst [vmem:[%s197 + $0x50] sm:$0x3] %v1109
      %1138 = vst [vmem:[%s197 + $0x58] sm:$0x3] %v1110
      %1139 = vst [vmem:[%s197 + $0x60] sm:$0x3] %v1111
      %1140 = vst [vmem:[%s197 + $0x68] sm:$0x3] %v1112
      %1141 = vst [vmem:[%s197 + $0x70] sm:$0x3] %v1113
      %1142 = vst [vmem:[%s197 + $0x78] sm:$0x3] %v1114
      %1143 = vst [vmem:[%s197 + $0x80] sm:$0x3] %v1115
      %vm1144 = vcmask 525312
      %1145 = vst.msk [vmem:[%s197 + $0x88] sm:$0x3] %vm1144, %v1116
      %p1146 = scmp.lt.s32.totalorder %s15, 1
      %s1147 = scalar_select %p1146, %s15, 1
      %s1148 = smul.addr %s1147, 18
      %s1149 = smul.addr %s1148, 8
      %s1150 = scalar_lea.vmem %s4, %s1149
      // Predicated region
      $region37: #{model_forward.1} parent=35 // pred_check
        %p1151 = pneg %p122
      $region38: #{model_forward.1} parent=35 // pred_check_branch
        %1153 = sbr.rel (%p1151) target = $region40
      $region39: #{model_forward.1} parent=35 // pred_region
        _
      $region40: #{model_forward.1} parent=35 // pred_fallthru
        _
    $region36: #{model_forward.1} parent=5 // pred_fallthru
      _
    %p1154 = scmp.le.s32.totalorder 2, %s10
    // Predicated region
    $region41: #{model_forward.1} parent=5 // pred_check
      %p1155 = pneg %p1154
    $region42: #{model_forward.1} parent=5 // pred_check_branch
      %1157 = sbr.rel (%p1155) target = $region44
    $region43: #{model_forward.1} parent=5 // pred_region
      %s1158 = ssub.s32 %s10, 2
      // Predicated region
      $region45: #{model_forward.1} parent=43 // pred_check
        %p1159 = pneg %p128
      $region46: #{model_forward.1} parent=43 // pred_check_branch
        %1161 = sbr.rel (%p1159) target = $region48
      $region47: #{model_forward.1} parent=43 // pred_region
        %p1162 = scmp.lt.s32.totalorder %s16, 1
        %s1163 = scalar_select %p1162, %s16, 1
        %s1164 = smul.addr %s1163, 18
        %s1165 = smul.addr %s1164, 8
        %s1166 = scalar_lea.vmem %s4, %s1165
      $region48: #{model_forward.1} parent=43 // pred_fallthru
        _
    $region44: #{model_forward.1} parent=5 // pred_fallthru
      _
  $region6: #{model_forward.1} parent=0 // loop_footer
    %s14 = sadd.s32 1, %s10
  $region7: #{model_forward.1} parent=0 // loop_footer_branch
    %9 = sbr.rel target = $region3
  $region8: #{model_forward.1} parent=0 // loop_exit
    _

</llo_original>
